<compile_context>
chip_gen: v5e
topology: v5e:2x2
jax: 0.10.0
libtpu: 0.0.40
codegen_flags: <defaults>
</compile_context>

<pallas_src>
import jax
import jax.numpy as jnp
from jax import lax
from jax.experimental import pallas as pl
from jax.experimental.pallas import tpu as pltpu


# ---------------------------------------------------------------------------
# Kernels
# ---------------------------------------------------------------------------
def _dot_nt(x_tile, w_tile):
    # x_tile: (tm, tk); w_tile: (tn, tk) in the native nn.Linear layout.
    # Contract the K axis of both (x @ W^T) on the MXU with an f32 accumulator.
    return lax.dot_general(
        x_tile,
        w_tile,
        dimension_numbers=(((1,), (1,)), ((), ())),
        preferred_element_type=jnp.float32,
    )


def _linear_relu_bias_kernel(x_ref, w_ref, b_ref, o_ref, acc_ref):
    # x_ref: (tm, tk)  w_ref: (tn, tk)  b_ref: (1, tn) f32  o_ref: (tm, tn)
    k = pl.program_id(2)

    @pl.when(k == 0)
    def _():
        # Fold the bias into the accumulator init (saves a full-tile add later).
        acc_ref[...] = jnp.broadcast_to(b_ref[...], acc_ref.shape)

    acc_ref[...] += _dot_nt(x_ref[...], w_ref[...])

    @pl.when(k == pl.num_programs(2) - 1)
    def _():
        o_ref[...] = jnp.maximum(acc_ref[...], 0.0).astype(o_ref.dtype)


def _linear_relu_nobias_kernel(x_ref, w_ref, o_ref, acc_ref):
    k = pl.program_id(2)

    @pl.when(k == 0)
    def _():
        acc_ref[...] = jnp.zeros_like(acc_ref)

    acc_ref[...] += _dot_nt(x_ref[...], w_ref[...])

    @pl.when(k == pl.num_programs(2) - 1)
    def _():
        o_ref[...] = jnp.maximum(acc_ref[...], 0.0).astype(o_ref.dtype)


# ---------------------------------------------------------------------------
# Wrapper
# ---------------------------------------------------------------------------
def _round_up(x, m):
    return ((x + m - 1) // m) * m


def _select_tiling_budget():
    """Generation-aware (tile caps, scoped-VMEM budget)."""
    vmem_bytes = None
    try:
        vmem_bytes = int(pltpu.get_tpu_info().vmem_capacity_bytes)
    except Exception:
        pass
    is_v7 = False
    try:
        is_v7 = "v7" in jax.devices()[0].device_kind.lower()
    except Exception:
        pass
    if (not is_v7) and vmem_bytes is not None and vmem_bytes >= 100 * 1024 * 1024:
        # v5e / v6e: 128 MiB VMEM per TensorCore -> go big (f32 working set ~36 MiB).
        return (2048, 1024, 512), 100 * 1024 * 1024
    # v7x (64 MiB per TensorCore) or unknown hardware: conservative regime.
    return (1024, 1024, 512), 48 * 1024 * 1024


def fused_linear_relu(x, weight, bias=None, *, tm=None, tn=None, tk=None,
                      operand_dtype=None):
    """relu(x @ weight.T + bias).

    x: (..., in_features); weight: (out_features, in_features) (native nn.Linear
    layout, NOT transposed); bias: (out_features,) or None.
    `operand_dtype=jnp.bfloat16` feeds the MXU bf16 operands (f32 accumulation
    is kept) when reduced operand precision is acceptable.
    """
    orig_shape = x.shape
    out_features, in_features = weight.shape
    assert orig_shape[-1] == in_features, "last dim of x must equal in_features"

    rows = 1
    for d in orig_shape[:-1]:
        rows *= int(d)
    M, K, N = rows, in_features, out_features

    x2d = x.reshape(M, K)
    w = weight  # native (N, K) layout — no wrapper transpose (saves a weight HBM pass)

    if operand_dtype is not None:
        x2d = x2d.astype(operand_dtype)
        w = w.astype(operand_dtype)

    op_itemsize = jnp.dtype(x2d.dtype).itemsize
    align_m = 16 if op_itemsize == 2 else (32 if op_itemsize == 1 else 8)

    (cap_m, cap_n, cap_k), vmem_limit = _select_tiling_budget()

    user_mn = (tm is not None) or (tn is not None)
    # --- tile policy (validate / align any user overrides) ---
    tm = min(cap_m, _round_up(M, align_m)) if tm is None else _round_up(tm, align_m)
    if tn is None:
        tn = N if N <= cap_n else cap_n          # tn == N avoids any N padding
    elif tn != N:
        tn = _round_up(tn, 128)
    if tk is None:
        tk = K if K <= cap_k else cap_k          # tk == K avoids any K padding
    elif tk != K:
        tk = _round_up(tk, 128)

    # v7x has 2 TensorCores sharded along the parallel axes: make sure the
    # (i, j) grid has at least 2 blocks so neither core sits idle.
    if not user_mn:
        while pl.cdiv(M, tm) * pl.cdiv(N, tn) < 2:
            if tn >= 256 and tn % 256 == 0:
                tn //= 2
            elif tm >= 2 * align_m and (tm // 2) % align_m == 0:
                tm //= 2
            else:
                break

    # --- padding: K must be zero-padded (garbage in the reduction dim would
    # corrupt real outputs); N only when it is actually tiled and ragged.
    # M is left ragged (out-of-range rows are never written back).
    Kp = _round_up(K, tk)
    Np = _round_up(N, tn)
    if Kp != K:
        x2d = jnp.pad(x2d, ((0, 0), (0, Kp - K)))
    if Kp != K or Np != N:
        w = jnp.pad(w, ((0, Np - N), (0, Kp - K)))

    has_bias = bias is not None
    if has_bias:
        b2d = bias.reshape(1, N).astype(jnp.float32)
        if Np != N:
            b2d = jnp.pad(b2d, ((0, 0), (0, Np - N)))

    grid = (pl.cdiv(M, tm), Np // tn, Kp // tk)

    x_spec = pl.BlockSpec((tm, tk), lambda i, j, k: (i, k))
    w_spec = pl.BlockSpec((tn, tk), lambda i, j, k: (j, k))   # native (N, K) tiles
    out_spec = pl.BlockSpec((tm, tn), lambda i, j, k: (i, j))
    scratch = [pltpu.VMEM((tm, tn), jnp.float32)]

    if has_bias:
        kernel = _linear_relu_bias_kernel
        in_specs = [x_spec, w_spec, pl.BlockSpec((1, tn), lambda i, j, k: (0, j))]
        args = (x2d, w, b2d)
    else:
        kernel = _linear_relu_nobias_kernel
        in_specs = [x_spec, w_spec]
        args = (x2d, w)

    out_itemsize = jnp.dtype(x.dtype).itemsize
    cost = pl.CostEstimate(
        flops=2 * M * N * K,
        transcendentals=0,
        bytes_accessed=(M * K + N * K) * op_itemsize
        + M * N * out_itemsize
        + (N * 4 if has_bias else 0),
    )

    out = pl.pallas_call(
        kernel,
        out_shape=jax.ShapeDtypeStruct((M, N), x.dtype),
        grid_spec=pltpu.PrefetchScalarGridSpec(
            num_scalar_prefetch=0,
            grid=grid,
            in_specs=in_specs,
            out_specs=out_spec,
            scratch_shapes=scratch,
        ),
        compiler_params=pltpu.CompilerParams(
            dimension_semantics=("parallel", "parallel", "arbitrary"),
            vmem_limit_bytes=vmem_limit,
        ),
        cost_estimate=cost,
    )(*args)

    return out.reshape(orig_shape[:-1] + (N,))


def reference_linear_relu(x, weight, bias):
    y = jnp.dot(x.astype(jnp.float32), weight.T.astype(jnp.float32))
    if bias is not None:
        y = y + bias.astype(jnp.float32)
    return jnp.maximum(y, 0.0).astype(x.dtype)


if __name__ == "__main__":
    key = jax.random.PRNGKey(0)
    batch, seq, in_features, out_features = 2, 8, 32, 64
    k_x, k_w, k_b = jax.random.split(key, 3)

    x = jax.random.normal(k_x, (batch, seq, in_features), dtype=jnp.float32)
    # Deterministic parameter init (Linear weight is (out_features, in_features)).
    weight = 0.1 * jax.random.normal(k_w, (out_features, in_features), dtype=jnp.float32)
    bias = 0.1 * jax.random.normal(k_b, (out_features,), dtype=jnp.float32)

    out = fused_linear_relu(x, weight, bias)
    out = jax.block_until_ready(out)

    ref = reference_linear_relu(x, weight, bias)
    assert out.shape == (batch, seq, out_features) and out.dtype == x.dtype
    assert jnp.allclose(out, ref, atol=1e-4, rtol=1e-4), "mismatch vs reference"

    # Also exercise the bias=None path (no synthetic zero-bias array/DMA).
    out_nb = jax.block_until_ready(fused_linear_relu(x, weight, None))
    ref_nb = reference_linear_relu(x, weight, None)
    assert jnp.allclose(out_nb, ref_nb, atol=1e-4, rtol=1e-4), "mismatch (no bias)"

    print("KERNEL_OK")
</pallas_src>

<mosaic_0001>
module attributes {stable_mosaic.version = 11 : i64} {
  func.func @_linear_relu_bias_kernel(%arg0: i32, %arg1: i32, %arg2: i32, %arg3: memref<8x32xf32, #tpu.memory_space<vmem>>, %arg4: memref<64x32xf32, #tpu.memory_space<vmem>>, %arg5: memref<1x64xf32, #tpu.memory_space<vmem>>, %arg6: memref<8x64xf32, #tpu.memory_space<vmem>>, %arg7: memref<8x64xf32, #tpu.memory_space<vmem>>) attributes {dimension_semantics = [#tpu.dimension_semantics<parallel>, #tpu.dimension_semantics<parallel>, #tpu.dimension_semantics<arbitrary>], iteration_bounds = array<i64: 2, 1, 1>, scalar_prefetch = 0 : i64, scratch_operands = 1 : i64, tpu.core_type = #tpu.core_type<tc>, window_params = [{transform_indices = @transform_0, window_bounds = array<i64: 8, 32>}, {transform_indices = @transform_1, window_bounds = array<i64: 64, 32>}, {transform_indices = @transform_2, window_bounds = array<i64: 1, 64>}, {transform_indices = @transform_3, window_bounds = array<i64: 8, 64>}]} {
    %c0_i32 = arith.constant 0 : i32
    %0 = arith.cmpi eq, %arg2, %c0_i32 : i32
    %1 = arith.extui %0 : i1 to i32
    %c0_i32_0 = arith.constant 0 : i32
    %2 = arith.cmpi ne, %1, %c0_i32_0 : i32
    scf.if %2 {
      %c0_10 = arith.constant 0 : index
      %c0_11 = arith.constant 0 : index
      %12 = vector.load %arg5[%c0_10, %c0_11] : memref<1x64xf32, #tpu.memory_space<vmem>>, vector<1x64xf32>
      %13 = vector.shape_cast %12 : vector<1x64xf32> to vector<1x64xf32>
      %14 = vector.broadcast %13 : vector<1x64xf32> to vector<8x64xf32>
      %c0_12 = arith.constant 0 : index
      %c0_13 = arith.constant 0 : index
      %15 = vector.load %arg7[%c0_12, %c0_13] : memref<8x64xf32, #tpu.memory_space<vmem>>, vector<8x64xf32>
      tpu.vector_store %arg7[%c0_12, %c0_13], %14 {strides = array<i32>} : memref<8x64xf32, #tpu.memory_space<vmem>>, vector<8x64xf32>,
    } else {
    }
    %c0 = arith.constant 0 : index
    %c0_1 = arith.constant 0 : index
    %3 = vector.load %arg7[%c0, %c0_1] : memref<8x64xf32, #tpu.memory_space<vmem>>, vector<8x64xf32>
    %c0_2 = arith.constant 0 : index
    %c0_3 = arith.constant 0 : index
    %4 = vector.load %arg3[%c0_2, %c0_3] : memref<8x32xf32, #tpu.memory_space<vmem>>, vector<8x32xf32>
    %c0_4 = arith.constant 0 : index
    %c0_5 = arith.constant 0 : index
    %5 = vector.load %arg4[%c0_4, %c0_5] : memref<64x32xf32, #tpu.memory_space<vmem>>, vector<64x32xf32>
    %cst = arith.constant dense<0.000000e+00> : vector<8x64xf32>
    %6 = tpu.matmul %4, %5, %cst {dimension_numbers = #tpu.dot_dimension_numbers<[1], [1], [0], [0], [0, 0, 1, 0], [], []>} : vector<8x32xf32>, vector<64x32xf32>, vector<8x64xf32> -> vector<8x64xf32>
    %7 = arith.addf %3, %6 : vector<8x64xf32>
    %c0_6 = arith.constant 0 : index
    %c0_7 = arith.constant 0 : index
    %8 = vector.load %arg7[%c0_6, %c0_7] : memref<8x64xf32, #tpu.memory_space<vmem>>, vector<8x64xf32>
    tpu.vector_store %arg7[%c0_6, %c0_7], %7 {strides = array<i32>} : memref<8x64xf32, #tpu.memory_space<vmem>>, vector<8x64xf32>,
    %c0_i32_8 = arith.constant 0 : i32
    %9 = arith.cmpi eq, %arg2, %c0_i32_8 : i32
    %10 = arith.extui %9 : i1 to i32
    %c0_i32_9 = arith.constant 0 : i32
    %11 = arith.cmpi ne, %10, %c0_i32_9 : i32
    scf.if %11 {
      %c0_10 = arith.constant 0 : index
      %c0_11 = arith.constant 0 : index
      %12 = vector.load %arg7[%c0_10, %c0_11] : memref<8x64xf32, #tpu.memory_space<vmem>>, vector<8x64xf32>
      %cst_12 = arith.constant 0.000000e+00 : f32
      %13 = vector.broadcast %cst_12 : f32 to vector<8x64xf32>
      %14 = arith.maximumf %12, %13 : vector<8x64xf32>
      %c0_13 = arith.constant 0 : index
      %c0_14 = arith.constant 0 : index
      %15 = vector.load %arg6[%c0_13, %c0_14] : memref<8x64xf32, #tpu.memory_space<vmem>>, vector<8x64xf32>
      tpu.vector_store %arg6[%c0_13, %c0_14], %14 {strides = array<i32>} : memref<8x64xf32, #tpu.memory_space<vmem>>, vector<8x64xf32>,
    } else {
    }
    return
  }
  func.func @transform_0(%arg0: i32, %arg1: i32, %arg2: i32) -> (i32, i32) {
    %c0_i32 = arith.constant 0 : i32
    return %arg0, %arg2 : i32, i32
  }
  func.func @transform_1(%arg0: i32, %arg1: i32, %arg2: i32) -> (i32, i32) {
    %c0_i32 = arith.constant 0 : i32
    return %arg1, %arg2 : i32, i32
  }
  func.func @transform_2(%arg0: i32, %arg1: i32, %arg2: i32) -> (i32, i32) {
    %c0_i32 = arith.constant 0 : i32
    %c0_i32_0 = arith.constant 0 : i32
    return %c0_i32, %arg1 : i32, i32
  }
  func.func @transform_3(%arg0: i32, %arg1: i32, %arg2: i32) -> (i32, i32) {
    %c0_i32 = arith.constant 0 : i32
    return %arg0, %arg1 : i32, i32
  }
}

</mosaic_0001>

<llo_original>
// kernel: tpu_custom_call.1
$region0: #{tpu_custom_call.1}
  #allocation0 [shape = 'u32[]', space=smem, size = 0x4, offset = 0x4, fixed_abs, tag = 'smem constant byte address 0x4 - core index']
  #allocation1 [shape = 'u32[72,128]{1,0:T(1,128)}', space=vmem, size = 0x9000, scoped, tag = 'internal scratch']
  #allocation2 [shape = 'f32[8,64]{1,0:T(8,128)}', space=vmem, size = 0x1000, scoped, tag = 'scratch operand']
  %s0 = inlined_call_operand.vmem [shape: f32[16,32], index: 0, kind: input, shape index: {}]
  %s1 = inlined_call_operand.vmem [shape: f32[64,32], index: 1, kind: input, shape index: {}]
  %s2 = inlined_call_operand.vmem [shape: f32[1,64], index: 2, kind: input, shape index: {}]
  %s3 = inlined_call_operand.hbm [shape: f32[16,64], index: 3, kind: output, shape index: {}]
  %s4 = sld [smem:[#allocation0]]
  $region53: #{tpu_custom_call.1} parent=0
    _
  %s6 = ssub.s32 1, %s4
  %s7 = scalar_select 0, %s6, %s4
  $region1: #{tpu_custom_call.1} parent=0
    #allocation3 [shape = 'u8[8192]{0}', space=vmem, size = 0x2000, scoped, tag = 'output window, operand 0']
    #allocation4 [shape = 's32[2]{0}', space=sflag, size = 0x8, scoped, tag = 'scoped memory for tpu_custom_call.1']
    %8 = vsyncpa [#allocation4], 0
    %s9 = scalar_lea.sflag [#allocation4], 1
    %10 = vsyncpa %s9, 0
    loop: start=0, step=1, limit=4
    $region2: #{tpu_custom_call.1} parent=1 // loop_pre_header
      _
    $region3: #{tpu_custom_call.1} parent=1 // loop_header
      %s12 = sphi 0, %s16
      %p13 = scmp.ge.s32.totalorder %s12, 4
      %s19 = sphi 0, %s38
      %s20 = sphi 0, %s34
      %s21 = sphi 0, %s30
      %s22 = sphi 0, %s19
      %s23 = sphi 0, %s20
      %s24 = sphi 0, %s21
      %s25 = sphi 0, %s22
      %s26 = sphi 0, %s23
      %s27 = sphi 0, %s24
      %s43 = sphi 0, %s45
      %s46 = sphi 0, %s43
      %s47 = sphi 0, %s46
      %s63 = sphi 0, %s47
      %s71 = sphi 0, %s73
      %s74 = sphi 0, %s71
      %s75 = sphi 0, %s74
      %s91 = sphi 0, %s75
      %s97 = sphi 0, %s99
      %s100 = sphi 0, %s97
      %s101 = sphi 0, %s100
      %s117 = sphi 0, %s101
      %s125 = sphi 0, %s127
      %s128 = sphi 0, %s125
      %s129 = sphi 0, %s128
      %s145 = sphi 0, %s129
    $region4: #{tpu_custom_call.1} parent=1 // loop_header_branch
      %15 = sbr.rel (%p13) target = $region8
    $region5: #{tpu_custom_call.1} parent=1 // loop_body
      %s17 = ssub.s32 %s12, 1
      %s18 = ssub.s32 %s12, 2
      %s28 = sadd.s32 1, %s21
      %p29 = scmp.ge.s32.totalorder %s28, 1
      %s30 = scalar_select %p29, 0, %s28
      %s31 = sadd.s32 1, %s20
      %s32 = scalar_select %p29, %s31, %s20
      %p33 = scmp.ge.s32.totalorder %s32, 1
      %s34 = scalar_select %p33, 0, %s32
      %s35 = sadd.s32 1, %s19
      %s36 = scalar_select %p33, %s35, %s19
      %p37 = scmp.ge.s32.totalorder %s36, 2
      %s38 = scalar_select %p37, 0, %s36
      %s39 = ssub.s32 %s19, %s38
      %s40 = ssub.s32 %s21, %s30
      %s41 = sor.u32 %s39, %s40
      %p42 = scmp.eq.s32.totalorder %s41, 0
      %s44 = sadd.s32 %s43, 1
      %s45 = scalar_select %p42, %s43, %s44
      %p48 = pneg %p42
      %p49 = scmp.eq.s32.totalorder %s12, 1
      %p50 = por %p48, %p49
      %p51 = scmp.ne.s32.totalorder %s43, %s46
      %p52 = scmp.eq.s32.totalorder %s12, 0
      %p53 = por %p51, %p52
      %p54 = scmp.ne.s32.totalorder %s43, %s46
      %p55 = scmp.eq.s32.totalorder %s17, 1
      %p56 = por %p54, %p55
      %p57 = scmp.ne.s32.totalorder %s46, %s47
      %p58 = scmp.eq.s32.totalorder %s17, 0
      %p59 = por %p57, %p58
      %p60 = scmp.ne.s32.totalorder %s46, %s47
      %p61 = scmp.eq.s32.totalorder %s18, 1
      %p62 = por %p60, %p61
      %p64 = scmp.ne.s32.totalorder %s47, %s63
      %p65 = scmp.eq.s32.totalorder %s18, 0
      %p66 = por %p64, %p65
      %s67 = ssub.s32 %s20, %s34
      %s68 = ssub.s32 %s21, %s30
      %s69 = sor.u32 %s67, %s68
      %p70 = scmp.eq.s32.totalorder %s69, 0
      %s72 = sadd.s32 %s71, 1
      %s73 = scalar_select %p70, %s71, %s72
      %p76 = pneg %p70
      %p77 = scmp.eq.s32.totalorder %s12, 1
      %p78 = por %p76, %p77
      %p79 = scmp.ne.s32.totalorder %s71, %s74
      %p80 = scmp.eq.s32.totalorder %s12, 0
      %p81 = por %p79, %p80
      %p82 = scmp.ne.s32.totalorder %s71, %s74
      %p83 = scmp.eq.s32.totalorder %s17, 1
      %p84 = por %p82, %p83
      %p85 = scmp.ne.s32.totalorder %s74, %s75
      %p86 = scmp.eq.s32.totalorder %s17, 0
      %p87 = por %p85, %p86
      %p88 = scmp.ne.s32.totalorder %s74, %s75
      %p89 = scmp.eq.s32.totalorder %s18, 1
      %p90 = por %p88, %p89
      %p92 = scmp.ne.s32.totalorder %s75, %s91
      %p93 = scmp.eq.s32.totalorder %s18, 0
      %p94 = por %p92, %p93
      %s95 = ssub.s32 %s20, %s34
      %p96 = scmp.eq.s32.totalorder %s95, 0
      %s98 = sadd.s32 %s97, 1
      %s99 = scalar_select %p96, %s97, %s98
      %p102 = pneg %p96
      %p103 = scmp.eq.s32.totalorder %s12, 1
      %p104 = por %p102, %p103
      %p105 = scmp.ne.s32.totalorder %s97, %s100
      %p106 = scmp.eq.s32.totalorder %s12, 0
      %p107 = por %p105, %p106
      %p108 = scmp.ne.s32.totalorder %s97, %s100
      %p109 = scmp.eq.s32.totalorder %s17, 1
      %p110 = por %p108, %p109
      %p111 = scmp.ne.s32.totalorder %s100, %s101
      %p112 = scmp.eq.s32.totalorder %s17, 0
      %p113 = por %p111, %p112
      %p114 = scmp.ne.s32.totalorder %s100, %s101
      %p115 = scmp.eq.s32.totalorder %s18, 1
      %p116 = por %p114, %p115
      %p118 = scmp.ne.s32.totalorder %s101, %s117
      %p119 = scmp.eq.s32.totalorder %s18, 0
      %p120 = por %p118, %p119
      %s121 = ssub.s32 %s19, %s38
      %s122 = ssub.s32 %s20, %s34
      %s123 = sor.u32 %s121, %s122
      %p124 = scmp.eq.s32.totalorder %s123, 0
      %s126 = sadd.s32 %s125, 1
      %s127 = scalar_select %p124, %s125, %s126
      %p130 = pneg %p124
      %p131 = scmp.eq.s32.totalorder %s12, 1
      %p132 = por %p130, %p131
      %p133 = scmp.ne.s32.totalorder %s125, %s128
      %p134 = scmp.eq.s32.totalorder %s12, 0
      %p135 = por %p133, %p134
      %p136 = scmp.ne.s32.totalorder %s125, %s128
      %p137 = scmp.eq.s32.totalorder %s17, 1
      %p138 = por %p136, %p137
      %p139 = scmp.ne.s32.totalorder %s128, %s129
      %p140 = scmp.eq.s32.totalorder %s17, 0
      %p141 = por %p139, %p140
      %p142 = scmp.ne.s32.totalorder %s128, %s129
      %p143 = scmp.eq.s32.totalorder %s18, 1
      %p144 = por %p142, %p143
      %p146 = scmp.ne.s32.totalorder %s129, %s145
      %p147 = scmp.eq.s32.totalorder %s18, 0
      %p148 = por %p146, %p147
      %p149 = scmp.le.s32.totalorder 1, %s12
      %p150 = scmp.lt.s32.totalorder %s12, 3
      %p151 = pnand %p149, %p150
      %p152 = pneg %p151
      // Predicated region
      $region9: #{tpu_custom_call.1} parent=5 // pred_check
        _
      $region10: #{tpu_custom_call.1} parent=5 // pred_check_branch
        %154 = sbr.rel (%p151) target = $region12
      $region11: #{tpu_custom_call.1} parent=5 // pred_region
        %s155 = ssub.s32 %s12, 1
        // Predicated region
        $region13: #{tpu_custom_call.1} parent=11 // pred_check
          %p156 = pneg %p87
        $region14: #{tpu_custom_call.1} parent=11 // pred_check_branch
          %158 = sbr.rel (%p156) target = $region16
        $region15: #{tpu_custom_call.1} parent=11 // pred_region
          %s159 = smul.u32 8, %s23
          %p160 = scmp.lt.s32.totalorder %s159, 7
          %s161 = scalar_select %p160, %s159, 7
          %p162 = scmp.lt.s32.totalorder %s24, 0
          %s163 = scalar_select %p162, %s24, 0
          %s164 = sadd.s32 %s163, %s161
          %s165 = smul.addr %s164, 8
          %s166 = scalar_lea.vmem %s1, %s165
          %s167 = smul.u32 8, %s23
        $region16: #{tpu_custom_call.1} parent=11 // pred_fallthru
          _
        // Predicated region
        $region17: #{tpu_custom_call.1} parent=11 // pred_check
          %p168 = pneg %p113
        $region18: #{tpu_custom_call.1} parent=11 // pred_check_branch
          %170 = sbr.rel (%p168) target = $region20
        $region19: #{tpu_custom_call.1} parent=11 // pred_region
          %p171 = scmp.lt.s32.totalorder %s23, 0
          %s172 = scalar_select %p171, %s23, 0
          %s173 = scalar_lea.vmem %s2, %s172
        $region20: #{tpu_custom_call.1} parent=11 // pred_fallthru
          _
      $region12: #{tpu_custom_call.1} parent=5 // pred_fallthru
        _
      %p174 = scmp.lt.s32.totalorder %s12, 2
      // Predicated region
      $region21: #{tpu_custom_call.1} parent=5 // pred_check
        %p175 = pneg %p174
      $region22: #{tpu_custom_call.1} parent=5 // pred_check_branch
        %177 = sbr.rel (%p175) target = $region24
      $region23: #{tpu_custom_call.1} parent=5 // pred_region
        // Predicated region
        $region25: #{tpu_custom_call.1} parent=23 // pred_check
          %p178 = pneg %p53
        $region26: #{tpu_custom_call.1} parent=23 // pred_check_branch
          %180 = sbr.rel (%p178) target = $region28
        $region27: #{tpu_custom_call.1} parent=23 // pred_region
          %p181 = scmp.lt.s32.totalorder %s19, 1
          %s182 = scalar_select %p181, %s19, 1
          %p183 = scmp.lt.s32.totalorder %s21, 0
          %s184 = scalar_select %p183, %s21, 0
          %s185 = sadd.s32 %s184, %s182
          %s186 = smul.addr %s185, 8
          %s187 = scalar_lea.vmem %s0, %s186
        $region28: #{tpu_custom_call.1} parent=23 // pred_fallthru
          _
      $region24: #{tpu_custom_call.1} parent=5 // pred_fallthru
        _
      %p188 = scmp.le.s32.totalorder 1, %s12
      %p189 = scmp.lt.s32.totalorder %s12, 3
      %p190 = pnand %p188, %p189
      %p191 = pneg %p190
      // Predicated region
      $region29: #{tpu_custom_call.1} parent=5 // pred_check
        _
      $region30: #{tpu_custom_call.1} parent=5 // pred_check_branch
        %193 = sbr.rel (%p190) target = $region32
      $region31: #{tpu_custom_call.1} parent=5 // pred_region
        %s194 = ssub.s32 %s12, 1
        %p195 = scmp.lt.s32.totalorder %s22, 1
        %s196 = scalar_select %p195, %s22, 1
        %p197 = scmp.lt.s32.totalorder %s24, 0
        %s198 = scalar_select %p197, %s24, 0
        %s199 = sadd.s32 %s198, %s196
        %s200 = smul.addr %s199, 8
        %s201 = scalar_lea.vmem %s0, %s200
        %p202 = pneg %p59
        %p203 = pneg %p56
        %s204 = smul.u32 8, %s23
        %p205 = scmp.lt.s32.totalorder %s204, 7
        %s206 = scalar_select %p205, %s204, 7
        %p207 = scmp.lt.s32.totalorder %s24, 0
        %s208 = scalar_select %p207, %s24, 0
        %s209 = sadd.s32 %s208, %s206
        %s210 = smul.addr %s209, 8
        %s211 = scalar_lea.vmem %s1, %s210
        %p212 = pneg %p87
        %p213 = pneg %p84
        %p214 = scmp.lt.s32.totalorder %s23, 0
        %s215 = scalar_select %p214, %s23, 0
        %s216 = scalar_lea.vmem %s2, %s215
        %p217 = pneg %p113
        %p218 = pneg %p110
        %p219 = pneg %p141
        %p220 = pneg %p138
        %s221 = sand.u32 %s128, 1
        %s222 = scalar_lea.sflag [#allocation4], %s221
        %s223 = sand.u32 %s128, 1
        %s224 = smul.addr %s223, 8
        %s225 = scalar_lea.vmem [#allocation3], %s224
        %p226 = scmp.lt.s32.totalorder %s22, 1
        %s227 = scalar_select %p226, %s22, 1
        %p228 = scmp.lt.s32.totalorder %s24, 0
        %s229 = scalar_select %p228, %s24, 0
        %s230 = sadd.s32 %s229, %s227
        %s231 = smul.addr %s230, 8
        %s232 = scalar_lea.vmem %s0, %s231
        %s233 = smul.u32 8, %s23
        %p234 = scmp.lt.s32.totalorder %s233, 7
        %s235 = scalar_select %p234, %s233, 7
        %p236 = scmp.lt.s32.totalorder %s24, 0
        %s237 = scalar_select %p236, %s24, 0
        %s238 = sadd.s32 %s237, %s235
        %s239 = smul.addr %s238, 8
        %s240 = scalar_lea.vmem %s1, %s239
        %s241 = smul.u32 8, %s23
        %p242 = scmp.lt.s32.totalorder %s23, 0
        %s243 = scalar_select %p242, %s23, 0
        %s244 = scalar_lea.vmem %s2, %s243
        %p245 = scmp.eq.s32.totalorder %s24, 0
        // Predicated region
        $region33: #{tpu_custom_call.1} parent=31 // pred_check
          %p246 = pneg %p245
        $region34: #{tpu_custom_call.1} parent=31 // pred_check_branch
          %248 = sbr.rel (%p246) target = $region36
        $region35: #{tpu_custom_call.1} parent=31 // pred_region
          %v249 = vld [vmem:[%s244] sm:$0x1]
          %v251 = vperm.slane %v249, 0
          %vm253 = vcmask 523264
          %254 = vst.msk [vmem:[#allocation2] sm:$0xff] %vm253, %v251
        $region36: #{tpu_custom_call.1} parent=31 // pred_fallthru
          _
        %v255 = vld [vmem:[#allocation2] sm:$0xff]
        %v256 = vld [vmem:[%s232] sm:$0xff]
        %v257 = vld [vmem:[%s240] sm:$0xff]
        %v258 = vld [vmem:[%s240 + $0x8] sm:$0xff]
        %v259 = vld [vmem:[%s240 + $0x10] sm:$0xff]
        %v260 = vld [vmem:[%s240 + $0x18] sm:$0xff]
        %v261 = vld [vmem:[%s240 + $0x20] sm:$0xff]
        %v262 = vld [vmem:[%s240 + $0x28] sm:$0xff]
        %v263 = vld [vmem:[%s240 + $0x30] sm:$0xff]
        %v264 = vld [vmem:[%s240 + $0x38] sm:$0xff]
        %vm265 = vcmask 261120
        %v267 = vsel %vm265, %v256, 0
        %v270 = vsel %vm265, %v257, 0
        %v273 = vsel %vm265, %v258, 0
        %v276 = vsel %vm265, %v259, 0
        %v279 = vsel %vm265, %v260, 0
        %v282 = vsel %vm265, %v261, 0
        %v285 = vsel %vm265, %v262, 0
        %v288 = vsel %vm265, %v263, 0
        %v291 = vsel %vm265, %v264, 0
        %293 = vmatpush.xpose.msra.mxu0 0.0
        %294 = vmatpush.xpose.msra.mxu0 0.0
        %295 = vmatpush.xpose.msra.mxu0 0.0
        %296 = vmatpush.xpose.msra.mxu0 0.0
        %297 = vmatpush.xpose.msra.mxu0 0.0
        %298 = vmatpush.xpose.msra.mxu0 0.0
        %299 = vmatpush.xpose.msra.mxu0 0.0
        %300 = vmatpush.xpose.msra.mxu0 0.0
        %301 = vmatpush.xpose.msra.mxu0 %v291
        %302 = vmatpush.xpose.msra.mxu0 %v288
        %303 = vmatpush.xpose.msra.mxu0 %v285
        %304 = vmatpush.xpose.msra.mxu0 %v282
        %305 = vmatpush.xpose.msra.mxu0 %v279
        %306 = vmatpush.xpose.msra.mxu0 %v276
        %307 = vmatpush.xpose.msra.mxu0 %v273
        %308 = vmatpush.xpose.msra.mxu0 %v270
        %309 = vmatmul.f32.gmra.mxu0 %v267
        %v310 = vpop.f32.mrf.mxu0
        %v311 = vadd.f32 0.0, %v310
        %312 = vdwg.mxu0
        %v313 = vadd.f32 %v255, %v311
        %vm314 = vcmask 523264
        %315 = vst.msk [vmem:[#allocation2] sm:$0xff] %vm314, %v313
        // Predicated region
        $region37: #{tpu_custom_call.1} parent=31 // pred_check
          %p316 = pneg %p245
        $region38: #{tpu_custom_call.1} parent=31 // pred_check_branch
          %318 = sbr.rel (%p316) target = $region40
        $region39: #{tpu_custom_call.1} parent=31 // pred_region
          %v319 = vld [vmem:[#allocation2] sm:$0xff]
          %v320 = vmax.f32 %v319, 0.0
          %321 = vst.msk [vmem:[%s225] sm:$0xff] %vm314, %v320
        $region40: #{tpu_custom_call.1} parent=31 // pred_fallthru
          _
        %s322 = sand.u32 %s128, 1
        %s323 = scalar_lea.sflag [#allocation4], %s322
        %s324 = sand.u32 %s128, 1
        %s325 = smul.addr %s324, 8
        %s326 = scalar_lea.vmem [#allocation3], %s325
        // Predicated region
        $region41: #{tpu_custom_call.1} parent=31 // pred_check
          %p327 = pneg %p138
        $region42: #{tpu_custom_call.1} parent=31 // pred_check_branch
          %329 = sbr.rel (%p327) target = $region44
        $region43: #{tpu_custom_call.1} parent=31 // pred_region
          %331 = vsyncadd %s323, 0
          %s332 = sadd.s32 %s23, %s22
          %s333 = smul.addr %s332, 8
          %s334 = scalar_lea.hbm %s3, %s333
          %s336 = sshll.u32 %s326, 4
          %s337 = int_to_ptr.vmem [resolvable:$true] %s336
          %s338 = sshll.u32 %s334, 4
          %s339 = int_to_ptr.hbm [resolvable:$true] %s338
          %341 = dma.vmem_to_hbm [thread:$0]  %s337, 128, %s339, %s323
        $region44: #{tpu_custom_call.1} parent=31 // pred_fallthru
          _
      $region32: #{tpu_custom_call.1} parent=5 // pred_fallthru
        _
      %p342 = scmp.le.s32.totalorder 2, %s12
      // Predicated region
      $region45: #{tpu_custom_call.1} parent=5 // pred_check
        %p343 = pneg %p342
      $region46: #{tpu_custom_call.1} parent=5 // pred_check_branch
        %345 = sbr.rel (%p343) target = $region48
      $region47: #{tpu_custom_call.1} parent=5 // pred_region
        %s346 = ssub.s32 %s12, 2
        // Predicated region
        $region49: #{tpu_custom_call.1} parent=47 // pred_check
          %p347 = pneg %p144
        $region50: #{tpu_custom_call.1} parent=47 // pred_check_branch
          %349 = sbr.rel (%p347) target = $region52
        $region51: #{tpu_custom_call.1} parent=47 // pred_region
          %s350 = sand.u32 %s129, 1
          %s351 = scalar_lea.sflag [#allocation4], %s350
          %s352 = sand.u32 %s129, 1
          %s353 = smul.addr %s352, 8
          %s354 = scalar_lea.vmem [#allocation3], %s353
          %356 = dma.done %s351, 128
        $region52: #{tpu_custom_call.1} parent=47 // pred_fallthru
          _
      $region48: #{tpu_custom_call.1} parent=5 // pred_fallthru
        _
    $region6: #{tpu_custom_call.1} parent=1 // loop_footer
      %s16 = sadd.s32 1, %s12
    $region7: #{tpu_custom_call.1} parent=1 // loop_footer_branch
      %11 = sbr.rel target = $region3
    $region8: #{tpu_custom_call.1} parent=1 // loop_exit
      _
    %357 = vsyncpa [#allocation4], 1
    %s358 = scalar_lea.sflag [#allocation4], 1
    %359 = vsyncpa %s358, 1

</llo_original>
